<compile_context>
chip_gen: v6e
topology: v6e:2x2x1
jax: 0.10.0
libtpu: 0.0.40
codegen_flags: <defaults>
</compile_context>

<pallas_src>
import functools
import inspect

import jax
import jax.numpy as jnp
from jax.experimental import pallas as pl
from jax.experimental.pallas import tpu as pltpu


def _round_up(x, m):
    return (x + m - 1) // m * m


def _cdiv(a, b):
    return -(-a // b)


def _supports_pipeline_mode():
    try:
        return hasattr(pl, "Buffered") and (
            "pipeline_mode" in inspect.signature(pl.BlockSpec).parameters)
    except (TypeError, ValueError):
        return False


_HAS_PIPELINE_MODE = _supports_pipeline_mode()


@functools.lru_cache(maxsize=1)
def _hw_params():
    """Returns (tile_vmem_budget, vmem_limit_bytes, num_tensorcores) for this chip."""
    vmem_cap = None
    num_tc = 1
    kind = ""
    try:
        kind = jax.devices()[0].device_kind.lower()
    except Exception:       # best-effort hardware query only
        pass
    try:
        info = pltpu.get_tpu_info()
        vmem_cap = getattr(info, "vmem_capacity_bytes", None)
        for attr in ("num_tensorcores", "tensorcores_per_chip", "num_cores",
                     "core_count"):
            v = getattr(info, attr, None)
            if isinstance(v, int) and v > 0:
                num_tc = v
                break
    except Exception:       # best-effort hardware query only
        pass
    is_v7 = "v7" in kind
    if is_v7:
        num_tc = max(num_tc, 2)
    if vmem_cap is None:
        vmem_cap = (64 if is_v7 else 128) * 1024 * 1024
    if vmem_cap <= 64 * 1024 * 1024:
        # v7x: 64 MiB per TensorCore -> leave headroom for weights / scratch.
        return 28 * 1024 * 1024, 48 * 1024 * 1024, num_tc
    # v5e / v6e: 128 MiB physical VMEM -> use more of it for bigger tiles.
    return 56 * 1024 * 1024, 96 * 1024 * 1024, num_tc


def _choose_tm(M, H, itemsize, tile_budget, num_tc):
    """Token-row tile: as large as the budget allows, multiple of 8, TC-balanced."""
    # x / out tiles are double-buffered in the I/O dtype; roughly four f32
    # row-width temporaries (x_f32, xn, up, pre-cast output) live in the body.
    per_row_bytes = 4 * H * itemsize + 4 * H * 4
    tm = tile_budget // per_row_bytes
    tm = max(8, min(1024, tm))
    tm = min(tm, _round_up(M, 8))        # never tile past the token count
    tm = max(8, (tm // 8) * 8)           # (8, 128) sublane constraint
    if num_tc > 1:
        # v7x megacore: make the tile count a multiple of num_tc so the
        # "parallel" grid axis load-balances every TensorCore (a 1-step grid
        # would idle a core).
        n_tiles = _round_up(max(_cdiv(M, tm), num_tc), num_tc)
        tm = max(8, _round_up(_cdiv(M, n_tiles), 8))
    return tm


def adapter_kernel(x_ref, wd_ref, bd_ref, wu_ref, bu_ref, o_ref):
    """Fused adapter forward on one (tm, H) tile of tokens.

    prepare_adapter_params() folds the LayerNorm affine (gamma/beta) into wd/bd
    and adapter_scaling into wu/bu, so the kernel computes:
        xn  = layernorm(x)                 (no affine)
        out = x + relu(xn @ wd + bd) @ wu + bu
    """
    x = x_ref[...].astype(jnp.float32)                          # (tm, H)

    # LayerNorm statistics in one pass (E[x^2] - mean^2), f32.
    mean = jnp.mean(x, axis=-1, keepdims=True)
    mean_sq = jnp.mean(x * x, axis=-1, keepdims=True)
    var = jnp.maximum(mean_sq - mean * mean, 0.0)
    xn = (x - mean) * jax.lax.rsqrt(var + 1e-5)

    # adapter_down (gamma folded in) + relu: bf16 MXU, f32 accumulate.
    h = jnp.dot(xn.astype(jnp.bfloat16), wd_ref[...],
                preferred_element_type=jnp.float32) + bd_ref[...]
    h = jnp.maximum(h, 0.0)                                     # (tm, bott_pad)

    # adapter_up (scaling folded in): bf16 MXU, f32 accumulate.
    up = jnp.dot(h.astype(jnp.bfloat16), wu_ref[...],
                 preferred_element_type=jnp.float32) + bu_ref[...]

    # dropout (eval mode => identity) + residual add.
    # TODO(synk): training-mode nn.Dropout (adapter_dropout > 0) not implemented.
    o_ref[...] = (x + up).astype(o_ref.dtype)


def prepare_adapter_params(gamma, beta, w_down, b_down, w_up, b_up, scale):
    """Host-side weight prep (call once per adapter and cache the result).

    Folds the LayerNorm affine into the down projection:
        (xn*gamma + beta) @ Wd + bd == xn @ (gamma[:,None]*Wd) + (beta @ Wd + bd)
    folds adapter_scaling into the up projection, zero-pads the bottleneck axis
    to a 128-lane multiple and casts MXU operands to bf16 (biases stay f32).
    """
    H, bott = w_down.shape
    w_down32 = w_down.astype(jnp.float32)
    wd_f = gamma.astype(jnp.float32)[:, None] * w_down32
    bd_f = beta.astype(jnp.float32) @ w_down32 + b_down.astype(jnp.float32)

    s = jnp.asarray(scale, jnp.float32).reshape(())
    wu_f = w_up.astype(jnp.float32) * s
    bu_f = b_up.astype(jnp.float32) * s

    bott_pad = _round_up(bott, 128)
    pad_b = bott_pad - bott
    wd_f = jnp.pad(wd_f, ((0, 0), (0, pad_b)))
    bd_f = jnp.pad(bd_f, ((0, pad_b),))
    wu_f = jnp.pad(wu_f, ((0, pad_b), (0, 0)))     # padded rows are zero

    return (wd_f.astype(jnp.bfloat16),
            bd_f.reshape(1, bott_pad),
            wu_f.astype(jnp.bfloat16),
            bu_f.reshape(1, H))


def _adapter_pallas_call(x2, wd, bd, wu, bu, *, tm, vmem_limit, single_buffer):
    """x2 is the unpadded (M, H) activation; tail grid block may overhang."""
    M, H = x2.shape
    bott_pad = wd.shape[1]
    n_tiles = _cdiv(M, tm)

    const_kwargs = ({"pipeline_mode": pl.Buffered(1)}
                    if (single_buffer and _HAS_PIPELINE_MODE) else {})

    def const_spec(shape):
        return pl.BlockSpec(shape, lambda i: (0, 0), **const_kwargs)

    return pl.pallas_call(
        adapter_kernel,
        out_shape=jax.ShapeDtypeStruct((M, H), x2.dtype),
        grid_spec=pltpu.PrefetchScalarGridSpec(
            num_scalar_prefetch=0,
            grid=(n_tiles,),
            in_specs=[
                pl.BlockSpec((tm, H), lambda i: (i, 0)),   # x tile (streamed)
                const_spec((H, bott_pad)),                 # W_down (gamma folded, bf16)
                const_spec((1, bott_pad)),                 # b_down (beta folded, f32)
                const_spec((bott_pad, H)),                 # W_up (scale folded, bf16)
                const_spec((1, H)),                        # b_up (scale folded, f32)
            ],
            out_specs=pl.BlockSpec((tm, H), lambda i: (i, 0)),
        ),
        compiler_params=pltpu.CompilerParams(
            dimension_semantics=("parallel",),
            vmem_limit_bytes=vmem_limit),
    )(x2, wd, bd, wu, bu)


def adapter_apply(x, wd_bf, bd_f, wu_bf, bu_f, *, tm=None):
    """x: (batch, seq, H); weights come from prepare_adapter_params()."""
    B, S, H = x.shape
    M = B * S
    tile_budget, vmem_limit, num_tc = _hw_params()
    if tm is None:
        tm = _choose_tm(M, H, x.dtype.itemsize, tile_budget, num_tc)
    x2 = x.reshape(M, H)   # no padding; Pallas masks the tail block's OOB writes
    try:
        out = _adapter_pallas_call(x2, wd_bf, bd_f, wu_bf, bu_f, tm=tm,
                                   vmem_limit=vmem_limit, single_buffer=True)
    except (TypeError, NotImplementedError, pltpu.LoweringException):
        # Narrow fallback: some jax versions accept pipeline_mode in the
        # BlockSpec signature but do not lower pl.Buffered(1) on TPU.
        out = _adapter_pallas_call(x2, wd_bf, bd_f, wu_bf, bu_f, tm=tm,
                                   vmem_limit=vmem_limit, single_buffer=False)
    return out.reshape(B, S, H)


def adapter_forward(x, gamma, beta, w_down, b_down, w_up, b_up, scale, *, tm=None):
    """Convenience wrapper. For repeated calls, run prepare_adapter_params()
    once at adapter init, cache the result, and call adapter_apply()."""
    params = prepare_adapter_params(gamma, beta, w_down, b_down, w_up, b_up, scale)
    return adapter_apply(x, *params, tm=tm)


def reference_forward(x, gamma, beta, w_down, b_down, w_up, b_up, scale):
    xf = x.astype(jnp.float32)
    mean = jnp.mean(xf, axis=-1, keepdims=True)
    var = jnp.mean(jnp.square(xf - mean), axis=-1, keepdims=True)
    xn = (xf - mean) * jax.lax.rsqrt(var + 1e-5) * gamma + beta
    h = jnp.maximum(xn @ w_down + b_down, 0.0)
    up = h @ w_up + b_up
    return (xf + scale * up).astype(x.dtype)


if __name__ == "__main__":
    # Module config: in_features = out_features = hidden = 32, bottleneck_size = 16,
    # non_linearity = "relu", adapter_dropout = 0.0 (eval), scaling = 1.0.
    batch, seq, hidden, bottleneck = 2, 8, 32, 16
    key = jax.random.PRNGKey(0)
    kx, kd, ku, kg, kb, kbd, kbu = jax.random.split(key, 7)

    x = jax.random.normal(kx, (batch, seq, hidden), dtype=jnp.float32)
    # PyTorch Linear stores (out, in); we keep the transpose so y = x @ W + b.
    w_down = 0.01 * jax.random.normal(kd, (hidden, bottleneck), dtype=jnp.float32)
    w_up = 0.01 * jax.random.normal(ku, (bottleneck, hidden), dtype=jnp.float32)
    # Non-trivial LN affine / biases exercise the folded-affine and bias paths
    # (the module inits gamma=1, beta=0, bias=0; after training they are arbitrary).
    gamma = 1.0 + 0.1 * jax.random.normal(kg, (hidden,), dtype=jnp.float32)
    beta = 0.1 * jax.random.normal(kb, (hidden,), dtype=jnp.float32)
    b_down = 0.1 * jax.random.normal(kbd, (bottleneck,), dtype=jnp.float32)
    b_up = 0.1 * jax.random.normal(kbu, (hidden,), dtype=jnp.float32)
    scale = jnp.array(1.0, dtype=jnp.float32)   # adapter_scaling (float or 'learned')

    params = prepare_adapter_params(gamma, beta, w_down, b_down, w_up, b_up, scale)

    out = adapter_apply(x, *params)
    jax.block_until_ready(out)
    ref = reference_forward(x, gamma, beta, w_down, b_down, w_up, b_up, scale)
    assert out.shape == x.shape
    assert jnp.allclose(out, ref, atol=1e-3, rtol=1e-3), \
        float(jnp.max(jnp.abs(out - ref)))

    # Tail case: B*S not a multiple of the row tile (overhanging last grid block,
    # no host-side pad / output slice).
    x_odd = jax.random.normal(kx, (batch, 5, hidden), dtype=jnp.float32)
    out_odd = adapter_apply(x_odd, *params)
    jax.block_until_ready(out_odd)
    ref_odd = reference_forward(x_odd, gamma, beta, w_down, b_down, w_up, b_up, scale)
    assert out_odd.shape == x_odd.shape
    assert jnp.allclose(out_odd, ref_odd, atol=1e-3, rtol=1e-3)

    # bf16 activations in / out (halves the HBM traffic that dominates this op;
    # LN statistics, accumulation and the residual stay f32 inside the kernel).
    x_bf = x.astype(jnp.bfloat16)
    out_bf = adapter_apply(x_bf, *params)
    jax.block_until_ready(out_bf)
    ref_bf = reference_forward(x_bf, gamma, beta, w_down, b_down, w_up, b_up, scale)
    assert out_bf.dtype == jnp.bfloat16
    assert jnp.allclose(out_bf.astype(jnp.float32), ref_bf.astype(jnp.float32),
                        atol=3e-2, rtol=3e-2)

    print("KERNEL_OK")
</pallas_src>

<mosaic_0001>
module attributes {stable_mosaic.version = 11 : i64} {
  func.func @adapter_kernel(%arg0: i32, %arg1: memref<16x32xf32, #tpu.memory_space<vmem>>, %arg2: memref<32x128xbf16, #tpu.memory_space<vmem>>, %arg3: memref<1x128xf32, #tpu.memory_space<vmem>>, %arg4: memref<128x32xbf16, #tpu.memory_space<vmem>>, %arg5: memref<1x32xf32, #tpu.memory_space<vmem>>, %arg6: memref<16x32xf32, #tpu.memory_space<vmem>>) attributes {dimension_semantics = [#tpu.dimension_semantics<parallel>], iteration_bounds = array<i64: 1>, scalar_prefetch = 0 : i64, scratch_operands = 0 : i64, tpu.core_type = #tpu.core_type<tc>, window_params = [{transform_indices = @transform_0, window_bounds = array<i64: 16, 32>}, {pipeline_mode = #tpu.pipeline_mode<synchronous>, transform_indices = @transform_1, window_bounds = array<i64: 32, 128>}, {pipeline_mode = #tpu.pipeline_mode<synchronous>, transform_indices = @transform_2, window_bounds = array<i64: 1, 128>}, {pipeline_mode = #tpu.pipeline_mode<synchronous>, transform_indices = @transform_3, window_bounds = array<i64: 128, 32>}, {pipeline_mode = #tpu.pipeline_mode<synchronous>, transform_indices = @transform_4, window_bounds = array<i64: 1, 32>}, {transform_indices = @transform_5, window_bounds = array<i64: 16, 32>}]} {
    %c0 = arith.constant 0 : index
    %c0_0 = arith.constant 0 : index
    %0 = vector.load %arg1[%c0, %c0_0] : memref<16x32xf32, #tpu.memory_space<vmem>>, vector<16x32xf32>
    %cst = arith.constant dense<0.000000e+00> : vector<16xf32>
    %1 = vector.multi_reduction <add>, %0, %cst [1] : vector<16x32xf32> to vector<16xf32>
    %2 = vector.shape_cast %1 : vector<16xf32> to vector<16x1xf32>
    %cst_1 = arith.constant 3.200000e+01 : f32
    %3 = vector.broadcast %cst_1 : f32 to vector<16x1xf32>
    %4 = arith.divf %2, %3 : vector<16x1xf32>
    %5 = arith.mulf %0, %0 : vector<16x32xf32>
    %cst_2 = arith.constant dense<0.000000e+00> : vector<16xf32>
    %6 = vector.multi_reduction <add>, %5, %cst_2 [1] : vector<16x32xf32> to vector<16xf32>
    %7 = vector.shape_cast %6 : vector<16xf32> to vector<16x1xf32>
    %cst_3 = arith.constant 3.200000e+01 : f32
    %8 = vector.broadcast %cst_3 : f32 to vector<16x1xf32>
    %9 = arith.divf %7, %8 : vector<16x1xf32>
    %10 = arith.mulf %4, %4 : vector<16x1xf32>
    %11 = arith.subf %9, %10 : vector<16x1xf32>
    %cst_4 = arith.constant 0.000000e+00 : f32
    %12 = vector.broadcast %cst_4 : f32 to vector<16x1xf32>
    %13 = arith.maximumf %11, %12 : vector<16x1xf32>
    %14 = vector.broadcast %4 : vector<16x1xf32> to vector<16x32xf32>
    %15 = arith.subf %0, %14 : vector<16x32xf32>
    %cst_5 = arith.constant 9.99999974E-6 : f32
    %16 = vector.broadcast %cst_5 : f32 to vector<16x1xf32>
    %17 = arith.addf %13, %16 : vector<16x1xf32>
    %18 = math.rsqrt %17 : vector<16x1xf32>
    %19 = vector.broadcast %18 : vector<16x1xf32> to vector<16x32xf32>
    %20 = arith.mulf %15, %19 : vector<16x32xf32>
    %21 = arith.truncf %20 : vector<16x32xf32> to vector<16x32xbf16>
    %c0_6 = arith.constant 0 : index
    %c0_7 = arith.constant 0 : index
    %22 = vector.load %arg2[%c0_6, %c0_7] : memref<32x128xbf16, #tpu.memory_space<vmem>>, vector<32x128xbf16>
    %cst_8 = arith.constant dense<0.000000e+00> : vector<16x128xf32>
    %23 = tpu.matmul %21, %22, %cst_8 {dimension_numbers = #tpu.dot_dimension_numbers<[1], [0], [0], [1], [0, 0, 1, 1], [], []>} : vector<16x32xbf16>, vector<32x128xbf16>, vector<16x128xf32> -> vector<16x128xf32>
    %c0_9 = arith.constant 0 : index
    %c0_10 = arith.constant 0 : index
    %24 = vector.load %arg3[%c0_9, %c0_10] : memref<1x128xf32, #tpu.memory_space<vmem>>, vector<1x128xf32>
    %25 = vector.broadcast %24 : vector<1x128xf32> to vector<16x128xf32>
    %26 = arith.addf %23, %25 : vector<16x128xf32>
    %cst_11 = arith.constant 0.000000e+00 : f32
    %27 = vector.broadcast %cst_11 : f32 to vector<16x128xf32>
    %28 = arith.maximumf %26, %27 : vector<16x128xf32>
    %29 = arith.truncf %28 : vector<16x128xf32> to vector<16x128xbf16>
    %c0_12 = arith.constant 0 : index
    %c0_13 = arith.constant 0 : index
    %30 = vector.load %arg4[%c0_12, %c0_13] : memref<128x32xbf16, #tpu.memory_space<vmem>>, vector<128x32xbf16>
    %cst_14 = arith.constant dense<0.000000e+00> : vector<16x32xf32>
    %31 = tpu.matmul %29, %30, %cst_14 {dimension_numbers = #tpu.dot_dimension_numbers<[1], [0], [0], [1], [0, 0, 1, 1], [], []>} : vector<16x128xbf16>, vector<128x32xbf16>, vector<16x32xf32> -> vector<16x32xf32>
    %c0_15 = arith.constant 0 : index
    %c0_16 = arith.constant 0 : index
    %32 = vector.load %arg5[%c0_15, %c0_16] : memref<1x32xf32, #tpu.memory_space<vmem>>, vector<1x32xf32>
    %33 = vector.broadcast %32 : vector<1x32xf32> to vector<16x32xf32>
    %34 = arith.addf %31, %33 : vector<16x32xf32>
    %35 = arith.addf %0, %34 : vector<16x32xf32>
    %c0_17 = arith.constant 0 : index
    %c0_18 = arith.constant 0 : index
    %36 = vector.load %arg6[%c0_17, %c0_18] : memref<16x32xf32, #tpu.memory_space<vmem>>, vector<16x32xf32>
    tpu.vector_store %arg6[%c0_17, %c0_18], %35 {strides = array<i32>} : memref<16x32xf32, #tpu.memory_space<vmem>>, vector<16x32xf32>,
    return
  }
  func.func @transform_0(%arg0: i32) -> (i32, i32) {
    %c0_i32 = arith.constant 0 : i32
    %c0_i32_0 = arith.constant 0 : i32
    return %arg0, %c0_i32 : i32, i32
  }
  func.func @transform_1(%arg0: i32) -> (i32, i32) {
    %c0_i32 = arith.constant 0 : i32
    %c0_i32_0 = arith.constant 0 : i32
    %c0_i32_1 = arith.constant 0 : i32
    return %c0_i32, %c0_i32_0 : i32, i32
  }
  func.func @transform_2(%arg0: i32) -> (i32, i32) {
    %c0_i32 = arith.constant 0 : i32
    %c0_i32_0 = arith.constant 0 : i32
    %c0_i32_1 = arith.constant 0 : i32
    return %c0_i32, %c0_i32_0 : i32, i32
  }
  func.func @transform_3(%arg0: i32) -> (i32, i32) {
    %c0_i32 = arith.constant 0 : i32
    %c0_i32_0 = arith.constant 0 : i32
    %c0_i32_1 = arith.constant 0 : i32
    return %c0_i32, %c0_i32_0 : i32, i32
  }
  func.func @transform_4(%arg0: i32) -> (i32, i32) {
    %c0_i32 = arith.constant 0 : i32
    %c0_i32_0 = arith.constant 0 : i32
    %c0_i32_1 = arith.constant 0 : i32
    return %c0_i32, %c0_i32_0 : i32, i32
  }
  func.func @transform_5(%arg0: i32) -> (i32, i32) {
    %c0_i32 = arith.constant 0 : i32
    %c0_i32_0 = arith.constant 0 : i32
    return %arg0, %c0_i32 : i32, i32
  }
}

</mosaic_0001>

<llo_original>
// kernel: tpu_custom_call.1
$region0: #{tpu_custom_call.1}
  #allocation0 [shape = 'u32[]', space=smem, size = 0x4, offset = 0x4, fixed_abs, tag = 'smem constant byte address 0x4 - core index']
  #allocation1 [shape = 'u32[144,128]{1,0:T(1,128)}', space=vmem, size = 0x12000, scoped, tag = 'internal scratch']
  %s0 = inlined_call_operand.vmem [shape: f32[16,32], index: 0, kind: input, shape index: {}]
  %s1 = inlined_call_operand.vmem [shape: bf16[32,128], index: 1, kind: input, shape index: {}]
  %s2 = inlined_call_operand.vmem [shape: f32[1,128], index: 2, kind: input, shape index: {}]
  %s3 = inlined_call_operand.vmem [shape: bf16[128,32], index: 3, kind: input, shape index: {}]
  %s4 = inlined_call_operand.vmem [shape: f32[1,32], index: 4, kind: input, shape index: {}]
  %s5 = inlined_call_operand.hbm [shape: f32[16,32], index: 5, kind: output, shape index: {}]
  %s6 = sld [smem:[#allocation0]]
  $region30: #{tpu_custom_call.1} parent=0
    _
  %s8 = ssub.s32 1, %s6
  %s9 = scalar_select 0, %s8, %s6
  $region1: #{tpu_custom_call.1} parent=0
    #allocation2 [shape = 'u8[8192]{0}', space=vmem, size = 0x2000, scoped, tag = 'output window, operand 0, single buffered']
    #allocation3 [shape = 's32[1]{0}', space=sflag, size = 0x4, scoped, tag = 'scoped memory for tpu_custom_call.1']
    %10 = vsyncpa [#allocation3], 0
    // Predicated region
    $region2: #{tpu_custom_call.1} parent=1 // pred_check
      _
    $region3: #{tpu_custom_call.1} parent=1 // pred_check_branch
      %12 = sbr.rel (0) target = $region5
    $region4: #{tpu_custom_call.1} parent=1 // pred_region
      _
    $region5: #{tpu_custom_call.1} parent=1 // pred_fallthru
      _
    // Predicated region
    $region6: #{tpu_custom_call.1} parent=1 // pred_check
      _
    $region7: #{tpu_custom_call.1} parent=1 // pred_check_branch
      %14 = sbr.rel (0) target = $region9
    $region8: #{tpu_custom_call.1} parent=1 // pred_region
      _
    $region9: #{tpu_custom_call.1} parent=1 // pred_fallthru
      _
    // Predicated region
    $region10: #{tpu_custom_call.1} parent=1 // pred_check
      _
    $region11: #{tpu_custom_call.1} parent=1 // pred_check_branch
      %16 = sbr.rel (0) target = $region13
    $region12: #{tpu_custom_call.1} parent=1 // pred_region
      _
    $region13: #{tpu_custom_call.1} parent=1 // pred_fallthru
      _
    // Predicated region
    $region14: #{tpu_custom_call.1} parent=1 // pred_check
      _
    $region15: #{tpu_custom_call.1} parent=1 // pred_check_branch
      %18 = sbr.rel (0) target = $region17
    $region16: #{tpu_custom_call.1} parent=1 // pred_region
      _
    $region17: #{tpu_custom_call.1} parent=1 // pred_fallthru
      _
    // Predicated region
    $region18: #{tpu_custom_call.1} parent=1 // pred_check
      _
    $region19: #{tpu_custom_call.1} parent=1 // pred_check_branch
      %20 = sbr.rel (0) target = $region21
    $region20: #{tpu_custom_call.1} parent=1 // pred_region
      _
    $region21: #{tpu_custom_call.1} parent=1 // pred_fallthru
      _
    %v22 = vld [vmem:[%s0] sm:$0xff]
    %v23 = vld [vmem:[%s0 + $0x8] sm:$0xff]
    %vm24 = vcmask 261120
    %v25 = vsel %vm24, %v22, 0.0
    %26 = vadd.xlane.f32.xlu0 %v25
    %v27 = vpop.xlane.xlu0 %26
    %v28 = vsel %vm24, %v23, 0.0
    %29 = vadd.xlane.f32.xlu0 %v28
    %v30 = vpop.xlane.xlu0 %29
    %v31 = vrcp.pop 32.0
    %v32 = vmul.f32 %v27, %v31
    %v33 = vmul.f32 %v30, %v31
    %v34 = vmul.f32 %v22, %v22
    %v35 = vmul.f32 %v23, %v23
    %v36 = vsel %vm24, %v34, 0.0
    %37 = vadd.xlane.f32.xlu0 %v36
    %v38 = vpop.xlane.xlu0 %37
    %v39 = vsel %vm24, %v35, 0.0
    %40 = vadd.xlane.f32.xlu0 %v39
    %v41 = vpop.xlane.xlu0 %40
    %v42 = vmul.f32 %v38, %v31
    %v43 = vmul.f32 %v41, %v31
    %v44 = vmul.f32 %v32, %v32
    %v45 = vmul.f32 %v33, %v33
    %v46 = vsub.f32 %v42, %v44
    %v47 = vsub.f32 %v43, %v45
    %v48 = vmax.f32 %v46, 0.0
    %v49 = vmax.f32 %v47, 0.0
    %v50 = vsub.f32 %v22, %v32
    %v51 = vsub.f32 %v23, %v33
    %v52 = vadd.f32 %v48, 1e-05
    %v53 = vadd.f32 %v49, 1e-05
    %v54 = vrsqrt.pop %v52
    %v55 = vrsqrt.pop %v53
    %v56 = vmul.f32 %v50, %v54
    %v57 = vmul.f32 %v51, %v55
    %v58 = vpack.c.bf16 %v57, %v56
    %v59 = vld [vmem:[%s1] sm:$0xf]
    %v60 = vld [vmem:[%s1 + $0x4] sm:$0xf]
    %v61 = vld [vmem:[%s1 + $0x8] sm:$0xf]
    %v62 = vld [vmem:[%s1 + $0xc] sm:$0xf]
    %v63 = vld [vmem:[%s2] sm:$0x1]
    %v65 = vlaneseq
    %v66 = vshrl.u32 %v65, 7
    %v67 = vsub.s32 0, %v66
    %v68 = vrot.slane %v63, %v67
    %v74 = vunpack.c.l.b16 %v59
    %v75 = vunpack.c.l.b16 %v60
    %v76 = vunpack.c.l.b16 %v61
    %v77 = vunpack.c.l.b16 %v62
    %v78 = vpack.c.b16 %v75, %v74
    %v79 = vpack.c.b16 %v77, %v76
    %v83 = vsel %vm24, %v58, 0
    %85 = vmatprep.subr.bf16.mxu0 0
    %86 = vmatpush1.bf16.msra.mxu0 0
    %87 = vmatprep.subr.bf16.mxu0 0
    %88 = vmatpush1.bf16.msra.mxu0 0
    %89 = vmatprep.subr.bf16.mxu0 0
    %90 = vmatpush1.bf16.msra.mxu0 0
    %91 = vmatprep.subr.bf16.mxu0 0
    %92 = vmatpush1.bf16.msra.mxu0 0
    %93 = vmatprep.subr.bf16.mxu0 0
    %94 = vmatpush1.bf16.msra.mxu0 0
    %95 = vmatprep.subr.bf16.mxu0 0
    %96 = vmatpush1.bf16.msra.mxu0 0
    %97 = vmatprep.subr.bf16.mxu0 0
    %98 = vmatpush1.bf16.msra.mxu0 %v79
    %99 = vmatprep.subr.bf16.mxu0 0
    %100 = vmatpush1.bf16.msra.mxu0 %v78
    %101 = vmatprep.subr.bf16.mxu0 0
    %102 = vmatpush2.bf16.msra.mxu0 0
    %103 = vmatprep.subr.bf16.mxu0 0
    %104 = vmatpush2.bf16.msra.mxu0 0
    %105 = vmatprep.subr.bf16.mxu0 0
    %106 = vmatpush2.bf16.msra.mxu0 0
    %107 = vmatprep.subr.bf16.mxu0 0
    %108 = vmatpush2.bf16.msra.mxu0 0
    %109 = vmatprep.subr.bf16.mxu0 0
    %110 = vmatpush2.bf16.msra.mxu0 0
    %111 = vmatprep.subr.bf16.mxu0 0
    %112 = vmatpush2.bf16.msra.mxu0 0
    %113 = vmatprep.subr.bf16.mxu0 0
    %114 = vmatpush2.bf16.msra.mxu0 0
    %115 = vmatprep.subr.bf16.mxu0 0
    %116 = vmatpush2.bf16.msra.mxu0 0
    %117 = vmatprep.mubr.bf16.mxu0 0
    %118 = vmatmul.mubr.bf16.gmra.mxu0 %v83
    %v119 = vpop.f32.mrf.mxu0
    %v120 = vadd.f32 %v68, %v119
    %v121 = vpop.f32.mrf.mxu0
    %v122 = vpop.f32.mrf.mxu0
    %v123 = vadd.f32 %v68, %v122
    %v124 = vpop.f32.mrf.mxu0
    %125 = vdwg.mxu0
    %v126 = vmax.f32 %v120, 0.0
    %v127 = vmax.f32 %v123, 0.0
    %v128 = vpack.c.bf16 %v127, %v126
    %v129 = vld [vmem:[%s3] sm:$0xf]
    %v130 = vld [vmem:[%s3 + $0x4] sm:$0xf]
    %v131 = vld [vmem:[%s3 + $0x8] sm:$0xf]
    %v132 = vld [vmem:[%s3 + $0xc] sm:$0xf]
    %v133 = vld [vmem:[%s3 + $0x10] sm:$0xf]
    %v134 = vld [vmem:[%s3 + $0x14] sm:$0xf]
    %v135 = vld [vmem:[%s3 + $0x18] sm:$0xf]
    %v136 = vld [vmem:[%s3 + $0x1c] sm:$0xf]
    %v137 = vld [vmem:[%s3 + $0x20] sm:$0xf]
    %v138 = vld [vmem:[%s3 + $0x24] sm:$0xf]
    %v139 = vld [vmem:[%s3 + $0x28] sm:$0xf]
    %v140 = vld [vmem:[%s3 + $0x2c] sm:$0xf]
    %v141 = vld [vmem:[%s3 + $0x30] sm:$0xf]
    %v142 = vld [vmem:[%s3 + $0x34] sm:$0xf]
    %v143 = vld [vmem:[%s3 + $0x38] sm:$0xf]
    %v144 = vld [vmem:[%s3 + $0x3c] sm:$0xf]
    %v145 = vld [vmem:[%s4] sm:$0x1]
    %v147 = vlaneseq
    %v148 = vshrl.u32 %v147, 7
    %v149 = vsub.s32 0, %v148
    %v150 = vrot.slane %v145, %v149
    %v168 = vunpack.c.l.b16 %v129
    %v169 = vunpack.c.l.b16 %v130
    %v170 = vunpack.c.l.b16 %v131
    %v171 = vunpack.c.l.b16 %v132
    %v172 = vunpack.c.l.b16 %v133
    %v173 = vunpack.c.l.b16 %v134
    %v174 = vunpack.c.l.b16 %v135
    %v175 = vunpack.c.l.b16 %v136
    %v176 = vunpack.c.l.b16 %v137
    %v177 = vunpack.c.l.b16 %v138
    %v178 = vunpack.c.l.b16 %v139
    %v179 = vunpack.c.l.b16 %v140
    %v180 = vunpack.c.l.b16 %v141
    %v181 = vunpack.c.l.b16 %v142
    %v182 = vunpack.c.l.b16 %v143
    %v183 = vunpack.c.l.b16 %v144
    %v184 = vpack.c.b16 %v169, %v168
    %v185 = vpack.c.b16 %v171, %v170
    %v186 = vpack.c.b16 %v173, %v172
    %v187 = vpack.c.b16 %v175, %v174
    %v188 = vpack.c.b16 %v177, %v176
    %v189 = vpack.c.b16 %v179, %v178
    %v190 = vpack.c.b16 %v181, %v180
    %v191 = vpack.c.b16 %v183, %v182
    %200 = vmatprep.subr.bf16.mxu0 0
    %201 = vmatpush1.bf16.msra.mxu0 %v191
    %202 = vmatprep.subr.bf16.mxu0 0
    %203 = vmatpush1.bf16.msra.mxu0 %v190
    %204 = vmatprep.subr.bf16.mxu0 0
    %205 = vmatpush1.bf16.msra.mxu0 %v189
    %206 = vmatprep.subr.bf16.mxu0 0
    %207 = vmatpush1.bf16.msra.mxu0 %v188
    %208 = vmatprep.subr.bf16.mxu0 0
    %209 = vmatpush1.bf16.msra.mxu0 %v187
    %210 = vmatprep.subr.bf16.mxu0 0
    %211 = vmatpush1.bf16.msra.mxu0 %v186
    %212 = vmatprep.subr.bf16.mxu0 0
    %213 = vmatpush1.bf16.msra.mxu0 %v185
    %214 = vmatprep.subr.bf16.mxu0 0
    %215 = vmatpush1.bf16.msra.mxu0 %v184
    %216 = vmatprep.subr.bf16.mxu0 0
    %217 = vmatpush2.bf16.msra.mxu0 0
    %218 = vmatprep.subr.bf16.mxu0 0
    %219 = vmatpush2.bf16.msra.mxu0 0
    %220 = vmatprep.subr.bf16.mxu0 0
    %221 = vmatpush2.bf16.msra.mxu0 0
    %222 = vmatprep.subr.bf16.mxu0 0
    %223 = vmatpush2.bf16.msra.mxu0 0
    %224 = vmatprep.subr.bf16.mxu0 0
    %225 = vmatpush2.bf16.msra.mxu0 0
    %226 = vmatprep.subr.bf16.mxu0 0
    %227 = vmatpush2.bf16.msra.mxu0 0
    %228 = vmatprep.subr.bf16.mxu0 0
    %229 = vmatpush2.bf16.msra.mxu0 0
    %230 = vmatprep.subr.bf16.mxu0 0
    %231 = vmatpush2.bf16.msra.mxu0 0
    %232 = vmatprep.mubr.bf16.mxu0 0
    %233 = vmatmul.mubr.bf16.gmra.mxu0 %v128
    %v234 = vpop.f32.mrf.mxu0
    %v235 = vadd.f32 %v150, %v234
    %v236 = vpop.f32.mrf.mxu0
    %v237 = vpop.f32.mrf.mxu0
    %v238 = vadd.f32 %v150, %v237
    %v239 = vpop.f32.mrf.mxu0
    %240 = vdwg.mxu0
    %v241 = vadd.f32 %v22, %v235
    %v242 = vadd.f32 %v23, %v238
    %243 = vst.msk [vmem:[#allocation2] sm:$0xff] %vm24, %v241
    %244 = vst.msk [vmem:[#allocation2 + $0x8] sm:$0xff] %vm24, %v242
    // Predicated region
    $region22: #{tpu_custom_call.1} parent=1 // pred_check
      _
    $region23: #{tpu_custom_call.1} parent=1 // pred_check_branch
      %246 = sbr.rel (0) target = $region25
    $region24: #{tpu_custom_call.1} parent=1 // pred_region
      %s248 = ssub.s32 256, 256
      %249 = vsyncadd [#allocation3], %s248
      %s250 = sshll.u32 [#allocation2], 4
      %s251 = int_to_ptr.vmem [resolvable:$true] %s250
      %256 = dma.vmem_to_hbm [thread:$0]  %s251, 256, %s5, [#allocation3], 128, 128, 8
    $region25: #{tpu_custom_call.1} parent=1 // pred_fallthru
      _
    // Predicated region
    $region26: #{tpu_custom_call.1} parent=1 // pred_check
      _
    $region27: #{tpu_custom_call.1} parent=1 // pred_check_branch
      %258 = sbr.rel (0) target = $region29
    $region28: #{tpu_custom_call.1} parent=1 // pred_region
      %259 = dma.done [#allocation3], 256
    $region29: #{tpu_custom_call.1} parent=1 // pred_fallthru
      _
    %260 = vsyncpa [#allocation3], 1

</llo_original>
